<compile_context>
chip_gen: v6e
topology: v6e:2x2x1
jax: 0.10.0
libtpu: 0.0.40
codegen_flags: <defaults>
</compile_context>

<pallas_src>
import functools

import jax
import jax.numpy as jnp
from jax.experimental import pallas as pl
from jax.experimental.pallas import tpu as pltpu

LANE = 128  # TPU lane width; one f32 vreg row.


def _round_up(n, m):
    return ((n + m - 1) // m) * m


def _cdiv(n, m):
    return -(-n // m)


def spinal_policy_kernel(x_ref, wx_ref, wh_ref, b_ref, o_ref, *,
                         half_rows, hidden):
    """SpinalNet policy forward on one batch tile.

    x_ref:  (TB, Dp)       raw input rows (f32), zero-padded cols past D.
    wx_ref: (Dp, 128)      bf16 combined x-skip weights: x1@w1 -> band0,
                           x2@w2a -> band1, x1@w3a -> band2, x2@w4a -> band3.
    wh_ref: (4, 128, 128)  bf16 packed hidden/output weights
                           (w2b, w3b, w4b, [wo1|wo2|wo3|wo4]).
    b_ref:  (8, 128)       f32 biases: row 0 = b1..b4 band-packed, row 1 = bo.
    o_ref:  (TB, 128)      lane-dense f32 output; action mean in lanes [0, A).
    """
    H = hidden

    # Hoisted lane-band masks (one (1,128) iota + 8 compares, shared by both
    # sub-tiles; sublane-broadcast against the (TB/2,128) activations).
    lane = jax.lax.broadcasted_iota(jnp.int32, (1, LANE), 1)
    masks = [(lane >= i * H) & (lane < (i + 1) * H) for i in range(4)]

    b_pre = b_ref[0:1, :]   # b1..b4, each in its own hidden band
    b_out = b_ref[1:2, :]   # bo in lanes [0, A)

    wx = wx_ref[...]
    w2 = wh_ref[0]
    w3 = wh_ref[1]
    w4 = wh_ref[2]
    wo = wh_ref[3]

    def bdot(lhs_f32, rhs_bf16):
        # bf16 MXU matmul with f32 accumulation.
        return jnp.dot(lhs_f32.astype(jnp.bfloat16), rhs_bf16,
                       preferred_element_type=jnp.float32)

    def band_relu(t, i):
        # ReLU restricted to hidden band i, zeros elsewhere (f32 VPU work).
        return jnp.where(masks[i], jnp.maximum(t, 0.0), 0.0)

    def chain(xb):
        # All four x-skip contributions + biases in one matmul.
        pre = bdot(xb, wx) + b_pre
        h1 = band_relu(pre, 0)                 # band [0,   H)
        h2 = band_relu(pre + bdot(h1, w2), 1)  # band [H,  2H)
        h3 = band_relu(pre + bdot(h2, w3), 2)  # band [2H, 3H)
        h4 = band_relu(pre + bdot(h3, w4), 3)  # band [3H, 4H)
        # Disjoint bands -> the sum IS concat(h1..h4); single output matmul.
        return bdot(h1 + h2 + h3 + h4, wo) + b_out

    # Two independent batch sub-tiles: their 5-matmul chains have no data
    # dependence, so the scheduler interleaves them and hides the per-layer
    # MXU result-drain / ReLU gaps.
    o_ref[0:half_rows, :] = chain(x_ref[0:half_rows, :]).astype(o_ref.dtype)
    o_ref[half_rows:, :] = chain(x_ref[half_rows:, :]).astype(o_ref.dtype)


def pack_params(params, in_dim, hidden, act_dim):
    """Pack the 16 SpinalNet tensors into bf16 weight slabs + one f32 bias slab.

    Called ONCE at init (outside the jitted forward); the packed slabs are
    passed to every forward call.
    """
    (w1, b1, w2a, w2b, b2, w3a, w3b, b3, w4a, w4b, b4,
     wo1, wo2, wo3, wo4, bo) = params
    half, H, A = in_dim // 2, hidden, act_dim
    assert 4 * H <= LANE, "band-packed kernel requires 4 * hidden <= 128"
    assert A <= LANE
    Dp = _round_up(in_dim, 8)

    # Combined x-skip weights: raw x (lanes [0, D)) -> all four hidden bands.
    Wx = jnp.zeros((Dp, LANE), jnp.float32)
    Wx = Wx.at[0:half, 0:H].set(w1)                    # x1 @ w1  -> band 0
    Wx = Wx.at[half:in_dim, H:2 * H].set(w2a)          # x2 @ w2a -> band 1
    Wx = Wx.at[0:half, 2 * H:3 * H].set(w3a)           # x1 @ w3a -> band 2
    Wx = Wx.at[half:in_dim, 3 * H:4 * H].set(w4a)      # x2 @ w4a -> band 3

    # Hidden-to-hidden + output-projection weights.
    Wh = jnp.zeros((4, LANE, LANE), jnp.float32)
    Wh = Wh.at[0, 0:H, H:2 * H].set(w2b)               # h1 -> band 1
    Wh = Wh.at[1, H:2 * H, 2 * H:3 * H].set(w3b)       # h2 -> band 2
    Wh = Wh.at[2, 2 * H:3 * H, 3 * H:4 * H].set(w4b)   # h3 -> band 3
    Wh = Wh.at[3, 0:H, 0:A].set(wo1)                   # concat(h) -> action
    Wh = Wh.at[3, H:2 * H, 0:A].set(wo2)
    Wh = Wh.at[3, 2 * H:3 * H, 0:A].set(wo3)
    Wh = Wh.at[3, 3 * H:4 * H, 0:A].set(wo4)

    Bsl = jnp.zeros((8, LANE), jnp.float32)
    Bsl = Bsl.at[0, 0:H].set(b1[0])
    Bsl = Bsl.at[0, H:2 * H].set(b2[0])
    Bsl = Bsl.at[0, 2 * H:3 * H].set(b3[0])
    Bsl = Bsl.at[0, 3 * H:4 * H].set(b4[0])
    Bsl = Bsl.at[1, 0:A].set(bo[0])

    return Wx.astype(jnp.bfloat16), Wh.astype(jnp.bfloat16), Bsl


@functools.partial(jax.jit, static_argnames=("hidden", "act_dim", "tile_b"))
def spinal_actor_critic_forward(x, wx, wh, bsl, *, hidden, act_dim,
                                tile_b=512):
    """x: (B, D) float32.  Returns the policy output (action mean), (B, A)."""
    B, D = x.shape
    Dp = wx.shape[0]

    # Batch tiling: minimize padding, keep tb a multiple of 16 (2-way in-kernel
    # split), and give >=2 grid steps when the batch allows so v7x's two
    # TensorCores both get work under the "parallel" grid axis.
    tile_b = max(16, (tile_b // 16) * 16)
    B8 = _round_up(B, 8)
    if B8 <= 16:
        tb = 16
    else:
        n_steps = max(_cdiv(B8, tile_b), 2)
        tb = min(tile_b, _round_up(_cdiv(B8, n_steps), 16))
    Bp = tb * _cdiv(B8, tb)

    # Only pad the raw x block (rows to Bp, cols to Dp) — no band planes.
    xp = jnp.pad(x, ((0, Bp - B), (0, Dp - D)))

    kern = functools.partial(spinal_policy_kernel,
                             half_rows=tb // 2, hidden=hidden)

    out = pl.pallas_call(
        kern,
        out_shape=jax.ShapeDtypeStruct((Bp, LANE), jnp.float32),
        grid=(Bp // tb,),
        in_specs=[
            pl.BlockSpec((tb, Dp), lambda i: (i, 0)),            # x streams
            pl.BlockSpec((Dp, LANE), lambda i: (0, 0)),          # Wx resident
            pl.BlockSpec((4, LANE, LANE), lambda i: (0, 0, 0)),  # Wh resident
            pl.BlockSpec((8, LANE), lambda i: (0, 0)),           # biases resident
        ],
        out_specs=pl.BlockSpec((tb, LANE), lambda i: (i, 0)),    # lane-dense
        compiler_params=pltpu.CompilerParams(
            dimension_semantics=("parallel",),  # batch sharding over TCs (v7x)
        ),
    )(xp, wx, wh, bsl)
    return out[:B, :act_dim]


def init_params(key, in_dim, hidden, act_dim):
    """Deterministic synthetic parameters matching the SpinalNet policy shapes."""
    half = in_dim // 2
    keys = jax.random.split(key, 16)
    scale = 0.1

    def rnd(k, shape):
        return scale * jax.random.normal(k, shape, dtype=jnp.float32)

    w1 = rnd(keys[0], (half, hidden));            b1 = rnd(keys[1], (1, hidden))
    w2a = rnd(keys[2], (half, hidden));           w2b = rnd(keys[3], (hidden, hidden))
    b2 = rnd(keys[4], (1, hidden))
    w3a = rnd(keys[5], (half, hidden));           w3b = rnd(keys[6], (hidden, hidden))
    b3 = rnd(keys[7], (1, hidden))
    w4a = rnd(keys[8], (half, hidden));           w4b = rnd(keys[9], (hidden, hidden))
    b4 = rnd(keys[10], (1, hidden))
    wo1 = rnd(keys[11], (hidden, act_dim))
    wo2 = rnd(keys[12], (hidden, act_dim))
    wo3 = rnd(keys[13], (hidden, act_dim))
    wo4 = rnd(keys[14], (hidden, act_dim))
    bo = rnd(keys[15], (1, act_dim))
    return (w1, b1, w2a, w2b, b2, w3a, w3b, b3, w4a, w4b, b4,
            wo1, wo2, wo3, wo4, bo)


def reference_forward(x, params):
    """Pure-JAX f32 reference of the same SpinalNet policy forward."""
    (w1, b1, w2a, w2b, b2, w3a, w3b, b3, w4a, w4b, b4,
     wo1, wo2, wo3, wo4, bo) = params
    half = x.shape[1] // 2
    x1, x2 = x[:, :half], x[:, half:]
    h1 = jax.nn.relu(x1 @ w1 + b1)
    h2 = jax.nn.relu(x2 @ w2a + h1 @ w2b + b2)
    h3 = jax.nn.relu(x1 @ w3a + h2 @ w3b + b3)
    h4 = jax.nn.relu(x2 @ w4a + h3 @ w4b + b4)
    return h1 @ wo1 + h2 @ wo2 + h3 @ wo3 + h4 @ wo4 + bo


if __name__ == "__main__":
    key = jax.random.PRNGKey(0)
    k_x, k_p = jax.random.split(key)

    B, D, H, A = 8, 16, 32, 4          # batch, obs dim, spinal layer width, action dim
    x = jax.random.normal(k_x, (B, D), dtype=jnp.float32)
    params = init_params(k_p, D, H, A)

    # Pack once at init (hoisted out of the per-call forward path).
    Wx, Wh, Bsl = pack_params(params, D, H, A)

    out = spinal_actor_critic_forward(x, Wx, Wh, Bsl, hidden=H, act_dim=A)
    out = jax.block_until_ready(out)

    ref = reference_forward(x, params)
    assert out.shape == (B, A)
    # bf16 MXU path vs f32 reference -> loosened tolerance.
    assert jnp.allclose(out, ref, atol=2e-2, rtol=2e-2), float(
        jnp.max(jnp.abs(out - ref)))

    print("KERNEL_OK")
</pallas_src>

<mosaic_0001>
module attributes {stable_mosaic.version = 11 : i64} {
  func.func @spinal_policy_kernel(%arg0: i32, %arg1: memref<16x16xf32, #tpu.memory_space<vmem>>, %arg2: memref<16x128xbf16, #tpu.memory_space<vmem>>, %arg3: memref<4x128x128xbf16, #tpu.memory_space<vmem>>, %arg4: memref<8x128xf32, #tpu.memory_space<vmem>>, %arg5: memref<16x128xf32, #tpu.memory_space<vmem>>) attributes {dimension_semantics = [#tpu.dimension_semantics<parallel>], iteration_bounds = array<i64: 1>, scalar_prefetch = 0 : i64, scratch_operands = 0 : i64, tpu.core_type = #tpu.core_type<tc>, window_params = [{transform_indices = @transform_0, window_bounds = array<i64: 16, 16>}, {pipeline_mode = #tpu.pipeline_mode<synchronous>, transform_indices = @transform_1, window_bounds = array<i64: 16, 128>}, {pipeline_mode = #tpu.pipeline_mode<synchronous>, transform_indices = @transform_2, window_bounds = array<i64: 4, 128, 128>}, {pipeline_mode = #tpu.pipeline_mode<synchronous>, transform_indices = @transform_3, window_bounds = array<i64: 8, 128>}, {transform_indices = @transform_4, window_bounds = array<i64: 16, 128>}]} {
    %0 = tpu.iota {dimensions = array<i32: 1>} : vector<1x128xi32>
    %c0_i32 = arith.constant 0 : i32
    %1 = vector.broadcast %c0_i32 : i32 to vector<1x128xi32>
    %2 = arith.cmpi sge, %0, %1 : vector<1x128xi32>
    %c32_i32 = arith.constant 32 : i32
    %3 = vector.broadcast %c32_i32 : i32 to vector<1x128xi32>
    %4 = arith.cmpi slt, %0, %3 : vector<1x128xi32>
    %5 = arith.andi %2, %4 : vector<1x128xi1>
    %c32_i32_0 = arith.constant 32 : i32
    %6 = vector.broadcast %c32_i32_0 : i32 to vector<1x128xi32>
    %7 = arith.cmpi sge, %0, %6 : vector<1x128xi32>
    %c64_i32 = arith.constant 64 : i32
    %8 = vector.broadcast %c64_i32 : i32 to vector<1x128xi32>
    %9 = arith.cmpi slt, %0, %8 : vector<1x128xi32>
    %10 = arith.andi %7, %9 : vector<1x128xi1>
    %c64_i32_1 = arith.constant 64 : i32
    %11 = vector.broadcast %c64_i32_1 : i32 to vector<1x128xi32>
    %12 = arith.cmpi sge, %0, %11 : vector<1x128xi32>
    %c96_i32 = arith.constant 96 : i32
    %13 = vector.broadcast %c96_i32 : i32 to vector<1x128xi32>
    %14 = arith.cmpi slt, %0, %13 : vector<1x128xi32>
    %15 = arith.andi %12, %14 : vector<1x128xi1>
    %c96_i32_2 = arith.constant 96 : i32
    %16 = vector.broadcast %c96_i32_2 : i32 to vector<1x128xi32>
    %17 = arith.cmpi sge, %0, %16 : vector<1x128xi32>
    %c128_i32 = arith.constant 128 : i32
    %18 = vector.broadcast %c128_i32 : i32 to vector<1x128xi32>
    %19 = arith.cmpi slt, %0, %18 : vector<1x128xi32>
    %20 = arith.andi %17, %19 : vector<1x128xi1>
    %c0 = arith.constant 0 : index
    %c0_3 = arith.constant 0 : index
    %21 = vector.load %arg4[%c0, %c0_3] : memref<8x128xf32, #tpu.memory_space<vmem>>, vector<1x128xf32>
    %c1 = arith.constant 1 : index
    %c0_4 = arith.constant 0 : index
    %22 = vector.load %arg4[%c1, %c0_4] : memref<8x128xf32, #tpu.memory_space<vmem>>, vector<1x128xf32>
    %c0_5 = arith.constant 0 : index
    %c0_6 = arith.constant 0 : index
    %23 = vector.load %arg2[%c0_5, %c0_6] : memref<16x128xbf16, #tpu.memory_space<vmem>>, vector<16x128xbf16>
    %c0_7 = arith.constant 0 : index
    %c0_8 = arith.constant 0 : index
    %c0_9 = arith.constant 0 : index
    %24 = vector.load %arg3[%c0_7, %c0_8, %c0_9] : memref<4x128x128xbf16, #tpu.memory_space<vmem>>, vector<1x128x128xbf16>
    %25 = vector.shape_cast %24 : vector<1x128x128xbf16> to vector<128x128xbf16>
    %c1_10 = arith.constant 1 : index
    %c0_11 = arith.constant 0 : index
    %c0_12 = arith.constant 0 : index
    %26 = vector.load %arg3[%c1_10, %c0_11, %c0_12] : memref<4x128x128xbf16, #tpu.memory_space<vmem>>, vector<1x128x128xbf16>
    %27 = vector.shape_cast %26 : vector<1x128x128xbf16> to vector<128x128xbf16>
    %c2 = arith.constant 2 : index
    %c0_13 = arith.constant 0 : index
    %c0_14 = arith.constant 0 : index
    %28 = vector.load %arg3[%c2, %c0_13, %c0_14] : memref<4x128x128xbf16, #tpu.memory_space<vmem>>, vector<1x128x128xbf16>
    %29 = vector.shape_cast %28 : vector<1x128x128xbf16> to vector<128x128xbf16>
    %c3 = arith.constant 3 : index
    %c0_15 = arith.constant 0 : index
    %c0_16 = arith.constant 0 : index
    %30 = vector.load %arg3[%c3, %c0_15, %c0_16] : memref<4x128x128xbf16, #tpu.memory_space<vmem>>, vector<1x128x128xbf16>
    %31 = vector.shape_cast %30 : vector<1x128x128xbf16> to vector<128x128xbf16>
    %c0_17 = arith.constant 0 : index
    %c0_18 = arith.constant 0 : index
    %32 = vector.load %arg1[%c0_17, %c0_18] : memref<16x16xf32, #tpu.memory_space<vmem>>, vector<8x16xf32>
    %33 = arith.truncf %32 : vector<8x16xf32> to vector<8x16xbf16>
    %cst = arith.constant dense<0.000000e+00> : vector<8x128xf32>
    %34 = tpu.matmul %33, %23, %cst {dimension_numbers = #tpu.dot_dimension_numbers<[1], [0], [0], [1], [0, 0, 1, 1], [], []>} : vector<8x16xbf16>, vector<16x128xbf16>, vector<8x128xf32> -> vector<8x128xf32>
    %35 = vector.broadcast %21 : vector<1x128xf32> to vector<8x128xf32>
    %36 = arith.addf %34, %35 : vector<8x128xf32>
    %cst_19 = arith.constant 0.000000e+00 : f32
    %37 = vector.broadcast %cst_19 : f32 to vector<8x128xf32>
    %38 = arith.maximumf %36, %37 : vector<8x128xf32>
    %cst_20 = arith.constant 0.000000e+00 : f32
    %39 = vector.shape_cast %5 : vector<1x128xi1> to vector<1x128xi1>
    %40 = vector.broadcast %39 : vector<1x128xi1> to vector<8x128xi1>
    %41 = vector.broadcast %cst_20 : f32 to vector<8x128xf32>
    %42 = arith.select %40, %38, %41 : vector<8x128xi1>, vector<8x128xf32>
    %43 = arith.truncf %42 : vector<8x128xf32> to vector<8x128xbf16>
    %cst_21 = arith.constant dense<0.000000e+00> : vector<8x128xf32>
    %44 = tpu.matmul %43, %25, %cst_21 {dimension_numbers = #tpu.dot_dimension_numbers<[1], [0], [0], [1], [0, 0, 1, 1], [], []>} : vector<8x128xbf16>, vector<128x128xbf16>, vector<8x128xf32> -> vector<8x128xf32>
    %45 = arith.addf %36, %44 : vector<8x128xf32>
    %cst_22 = arith.constant 0.000000e+00 : f32
    %46 = vector.broadcast %cst_22 : f32 to vector<8x128xf32>
    %47 = arith.maximumf %45, %46 : vector<8x128xf32>
    %cst_23 = arith.constant 0.000000e+00 : f32
    %48 = vector.shape_cast %10 : vector<1x128xi1> to vector<1x128xi1>
    %49 = vector.broadcast %48 : vector<1x128xi1> to vector<8x128xi1>
    %50 = vector.broadcast %cst_23 : f32 to vector<8x128xf32>
    %51 = arith.select %49, %47, %50 : vector<8x128xi1>, vector<8x128xf32>
    %52 = arith.truncf %51 : vector<8x128xf32> to vector<8x128xbf16>
    %cst_24 = arith.constant dense<0.000000e+00> : vector<8x128xf32>
    %53 = tpu.matmul %52, %27, %cst_24 {dimension_numbers = #tpu.dot_dimension_numbers<[1], [0], [0], [1], [0, 0, 1, 1], [], []>} : vector<8x128xbf16>, vector<128x128xbf16>, vector<8x128xf32> -> vector<8x128xf32>
    %54 = arith.addf %36, %53 : vector<8x128xf32>
    %cst_25 = arith.constant 0.000000e+00 : f32
    %55 = vector.broadcast %cst_25 : f32 to vector<8x128xf32>
    %56 = arith.maximumf %54, %55 : vector<8x128xf32>
    %cst_26 = arith.constant 0.000000e+00 : f32
    %57 = vector.shape_cast %15 : vector<1x128xi1> to vector<1x128xi1>
    %58 = vector.broadcast %57 : vector<1x128xi1> to vector<8x128xi1>
    %59 = vector.broadcast %cst_26 : f32 to vector<8x128xf32>
    %60 = arith.select %58, %56, %59 : vector<8x128xi1>, vector<8x128xf32>
    %61 = arith.truncf %60 : vector<8x128xf32> to vector<8x128xbf16>
    %cst_27 = arith.constant dense<0.000000e+00> : vector<8x128xf32>
    %62 = tpu.matmul %61, %29, %cst_27 {dimension_numbers = #tpu.dot_dimension_numbers<[1], [0], [0], [1], [0, 0, 1, 1], [], []>} : vector<8x128xbf16>, vector<128x128xbf16>, vector<8x128xf32> -> vector<8x128xf32>
    %63 = arith.addf %36, %62 : vector<8x128xf32>
    %cst_28 = arith.constant 0.000000e+00 : f32
    %64 = vector.broadcast %cst_28 : f32 to vector<8x128xf32>
    %65 = arith.maximumf %63, %64 : vector<8x128xf32>
    %cst_29 = arith.constant 0.000000e+00 : f32
    %66 = vector.shape_cast %20 : vector<1x128xi1> to vector<1x128xi1>
    %67 = vector.broadcast %66 : vector<1x128xi1> to vector<8x128xi1>
    %68 = vector.broadcast %cst_29 : f32 to vector<8x128xf32>
    %69 = arith.select %67, %65, %68 : vector<8x128xi1>, vector<8x128xf32>
    %70 = arith.addf %42, %51 : vector<8x128xf32>
    %71 = arith.addf %70, %60 : vector<8x128xf32>
    %72 = arith.addf %71, %69 : vector<8x128xf32>
    %73 = arith.truncf %72 : vector<8x128xf32> to vector<8x128xbf16>
    %cst_30 = arith.constant dense<0.000000e+00> : vector<8x128xf32>
    %74 = tpu.matmul %73, %31, %cst_30 {dimension_numbers = #tpu.dot_dimension_numbers<[1], [0], [0], [1], [0, 0, 1, 1], [], []>} : vector<8x128xbf16>, vector<128x128xbf16>, vector<8x128xf32> -> vector<8x128xf32>
    %75 = vector.broadcast %22 : vector<1x128xf32> to vector<8x128xf32>
    %76 = arith.addf %74, %75 : vector<8x128xf32>
    %c0_31 = arith.constant 0 : index
    %c0_32 = arith.constant 0 : index
    %77 = vector.load %arg5[%c0_31, %c0_32] : memref<16x128xf32, #tpu.memory_space<vmem>>, vector<8x128xf32>
    tpu.vector_store %arg5[%c0_31, %c0_32], %76 {strides = array<i32>} : memref<16x128xf32, #tpu.memory_space<vmem>>, vector<8x128xf32>,
    %c8 = arith.constant 8 : index
    %c0_33 = arith.constant 0 : index
    %78 = vector.load %arg1[%c8, %c0_33] : memref<16x16xf32, #tpu.memory_space<vmem>>, vector<8x16xf32>
    %79 = arith.truncf %78 : vector<8x16xf32> to vector<8x16xbf16>
    %cst_34 = arith.constant dense<0.000000e+00> : vector<8x128xf32>
    %80 = tpu.matmul %79, %23, %cst_34 {dimension_numbers = #tpu.dot_dimension_numbers<[1], [0], [0], [1], [0, 0, 1, 1], [], []>} : vector<8x16xbf16>, vector<16x128xbf16>, vector<8x128xf32> -> vector<8x128xf32>
    %81 = vector.broadcast %21 : vector<1x128xf32> to vector<8x128xf32>
    %82 = arith.addf %80, %81 : vector<8x128xf32>
    %cst_35 = arith.constant 0.000000e+00 : f32
    %83 = vector.broadcast %cst_35 : f32 to vector<8x128xf32>
    %84 = arith.maximumf %82, %83 : vector<8x128xf32>
    %cst_36 = arith.constant 0.000000e+00 : f32
    %85 = vector.shape_cast %5 : vector<1x128xi1> to vector<1x128xi1>
    %86 = vector.broadcast %85 : vector<1x128xi1> to vector<8x128xi1>
    %87 = vector.broadcast %cst_36 : f32 to vector<8x128xf32>
    %88 = arith.select %86, %84, %87 : vector<8x128xi1>, vector<8x128xf32>
    %89 = arith.truncf %88 : vector<8x128xf32> to vector<8x128xbf16>
    %cst_37 = arith.constant dense<0.000000e+00> : vector<8x128xf32>
    %90 = tpu.matmul %89, %25, %cst_37 {dimension_numbers = #tpu.dot_dimension_numbers<[1], [0], [0], [1], [0, 0, 1, 1], [], []>} : vector<8x128xbf16>, vector<128x128xbf16>, vector<8x128xf32> -> vector<8x128xf32>
    %91 = arith.addf %82, %90 : vector<8x128xf32>
    %cst_38 = arith.constant 0.000000e+00 : f32
    %92 = vector.broadcast %cst_38 : f32 to vector<8x128xf32>
    %93 = arith.maximumf %91, %92 : vector<8x128xf32>
    %cst_39 = arith.constant 0.000000e+00 : f32
    %94 = vector.shape_cast %10 : vector<1x128xi1> to vector<1x128xi1>
    %95 = vector.broadcast %94 : vector<1x128xi1> to vector<8x128xi1>
    %96 = vector.broadcast %cst_39 : f32 to vector<8x128xf32>
    %97 = arith.select %95, %93, %96 : vector<8x128xi1>, vector<8x128xf32>
    %98 = arith.truncf %97 : vector<8x128xf32> to vector<8x128xbf16>
    %cst_40 = arith.constant dense<0.000000e+00> : vector<8x128xf32>
    %99 = tpu.matmul %98, %27, %cst_40 {dimension_numbers = #tpu.dot_dimension_numbers<[1], [0], [0], [1], [0, 0, 1, 1], [], []>} : vector<8x128xbf16>, vector<128x128xbf16>, vector<8x128xf32> -> vector<8x128xf32>
    %100 = arith.addf %82, %99 : vector<8x128xf32>
    %cst_41 = arith.constant 0.000000e+00 : f32
    %101 = vector.broadcast %cst_41 : f32 to vector<8x128xf32>
    %102 = arith.maximumf %100, %101 : vector<8x128xf32>
    %cst_42 = arith.constant 0.000000e+00 : f32
    %103 = vector.shape_cast %15 : vector<1x128xi1> to vector<1x128xi1>
    %104 = vector.broadcast %103 : vector<1x128xi1> to vector<8x128xi1>
    %105 = vector.broadcast %cst_42 : f32 to vector<8x128xf32>
    %106 = arith.select %104, %102, %105 : vector<8x128xi1>, vector<8x128xf32>
    %107 = arith.truncf %106 : vector<8x128xf32> to vector<8x128xbf16>
    %cst_43 = arith.constant dense<0.000000e+00> : vector<8x128xf32>
    %108 = tpu.matmul %107, %29, %cst_43 {dimension_numbers = #tpu.dot_dimension_numbers<[1], [0], [0], [1], [0, 0, 1, 1], [], []>} : vector<8x128xbf16>, vector<128x128xbf16>, vector<8x128xf32> -> vector<8x128xf32>
    %109 = arith.addf %82, %108 : vector<8x128xf32>
    %cst_44 = arith.constant 0.000000e+00 : f32
    %110 = vector.broadcast %cst_44 : f32 to vector<8x128xf32>
    %111 = arith.maximumf %109, %110 : vector<8x128xf32>
    %cst_45 = arith.constant 0.000000e+00 : f32
    %112 = vector.shape_cast %20 : vector<1x128xi1> to vector<1x128xi1>
    %113 = vector.broadcast %112 : vector<1x128xi1> to vector<8x128xi1>
    %114 = vector.broadcast %cst_45 : f32 to vector<8x128xf32>
    %115 = arith.select %113, %111, %114 : vector<8x128xi1>, vector<8x128xf32>
    %116 = arith.addf %88, %97 : vector<8x128xf32>
    %117 = arith.addf %116, %106 : vector<8x128xf32>
    %118 = arith.addf %117, %115 : vector<8x128xf32>
    %119 = arith.truncf %118 : vector<8x128xf32> to vector<8x128xbf16>
    %cst_46 = arith.constant dense<0.000000e+00> : vector<8x128xf32>
    %120 = tpu.matmul %119, %31, %cst_46 {dimension_numbers = #tpu.dot_dimension_numbers<[1], [0], [0], [1], [0, 0, 1, 1], [], []>} : vector<8x128xbf16>, vector<128x128xbf16>, vector<8x128xf32> -> vector<8x128xf32>
    %121 = vector.broadcast %22 : vector<1x128xf32> to vector<8x128xf32>
    %122 = arith.addf %120, %121 : vector<8x128xf32>
    %c8_47 = arith.constant 8 : index
    %c0_48 = arith.constant 0 : index
    %123 = vector.load %arg5[%c8_47, %c0_48] : memref<16x128xf32, #tpu.memory_space<vmem>>, vector<8x128xf32>
    tpu.vector_store %arg5[%c8_47, %c0_48], %122 {strides = array<i32>} : memref<16x128xf32, #tpu.memory_space<vmem>>, vector<8x128xf32>,
    return
  }
  func.func @transform_0(%arg0: i32) -> (i32, i32) {
    %c0_i32 = arith.constant 0 : i32
    %c0_i32_0 = arith.constant 0 : i32
    return %arg0, %c0_i32 : i32, i32
  }
  func.func @transform_1(%arg0: i32) -> (i32, i32) {
    %c0_i32 = arith.constant 0 : i32
    %c0_i32_0 = arith.constant 0 : i32
    %c0_i32_1 = arith.constant 0 : i32
    return %c0_i32, %c0_i32_0 : i32, i32
  }
  func.func @transform_2(%arg0: i32) -> (i32, i32, i32) {
    %c0_i32 = arith.constant 0 : i32
    %c0_i32_0 = arith.constant 0 : i32
    %c0_i32_1 = arith.constant 0 : i32
    %c0_i32_2 = arith.constant 0 : i32
    return %c0_i32, %c0_i32_0, %c0_i32_1 : i32, i32, i32
  }
  func.func @transform_3(%arg0: i32) -> (i32, i32) {
    %c0_i32 = arith.constant 0 : i32
    %c0_i32_0 = arith.constant 0 : i32
    %c0_i32_1 = arith.constant 0 : i32
    return %c0_i32, %c0_i32_0 : i32, i32
  }
  func.func @transform_4(%arg0: i32) -> (i32, i32) {
    %c0_i32 = arith.constant 0 : i32
    %c0_i32_0 = arith.constant 0 : i32
    return %arg0, %c0_i32 : i32, i32
  }
}

</mosaic_0001>

<llo_original>
// kernel: spinal_actor_critic_forward.1
$region0: #{spinal_actor_critic_forward.1}
  #allocation0 [shape = 'u32[]', space=smem, size = 0x4, offset = 0x4, fixed_abs, tag = 'smem constant byte address 0x4 - core index']
  #allocation1 [shape = 'u32[144,128]{1,0:T(1,128)}', space=vmem, size = 0x12000, scoped, tag = 'internal scratch']
  %s0 = inlined_call_operand.vmem [shape: f32[16,16], index: 0, kind: input, shape index: {}]
  %s1 = inlined_call_operand.vmem [shape: bf16[16,128], index: 1, kind: input, shape index: {}]
  %s2 = inlined_call_operand.hbm [shape: bf16[4,128,128], index: 2, kind: input, shape index: {}]
  %s3 = inlined_call_operand.vmem [shape: f32[8,128], index: 3, kind: input, shape index: {}]
  %s4 = inlined_call_operand.vmem [shape: f32[16,128], index: 4, kind: output, shape index: {}]
  %s5 = sld [smem:[#allocation0]]
  $region30: #{spinal_actor_critic_forward.1} parent=0
    _
  %s7 = ssub.s32 1, %s5
  %s8 = scalar_select 0, %s7, %s5
  $region1: #{spinal_actor_critic_forward.1} parent=0
    #allocation2 [shape = 'u8[131072]{0}', space=vmem, size = 0x20000, scoped, tag = 'input window, operand 2, single buffered']
    #allocation3 [shape = 's32[1]{0}', space=sflag, size = 0x4, scoped, tag = 'scoped memory for spinal_actor_critic_forward.1']
    %9 = vsyncpa [#allocation3], 0
    // Predicated region
    $region2: #{spinal_actor_critic_forward.1} parent=1 // pred_check
      _
    $region3: #{spinal_actor_critic_forward.1} parent=1 // pred_check_branch
      %11 = sbr.rel (0) target = $region5
    $region4: #{spinal_actor_critic_forward.1} parent=1 // pred_region
      _
    $region5: #{spinal_actor_critic_forward.1} parent=1 // pred_fallthru
      _
    // Predicated region
    $region6: #{spinal_actor_critic_forward.1} parent=1 // pred_check
      _
    $region7: #{spinal_actor_critic_forward.1} parent=1 // pred_check_branch
      %13 = sbr.rel (0) target = $region9
    $region8: #{spinal_actor_critic_forward.1} parent=1 // pred_region
      _
    $region9: #{spinal_actor_critic_forward.1} parent=1 // pred_fallthru
      _
    // Predicated region
    $region10: #{spinal_actor_critic_forward.1} parent=1 // pred_check
      _
    $region11: #{spinal_actor_critic_forward.1} parent=1 // pred_check_branch
      %15 = sbr.rel (0) target = $region13
    $region12: #{spinal_actor_critic_forward.1} parent=1 // pred_region
      %s17 = ssub.s32 4096, 4096
      %18 = vsyncadd [#allocation3], %s17
      %s19 = sshll.u32 [#allocation2], 4
      %s20 = int_to_ptr.vmem [resolvable:$true] %s19
      %25 = dma.hbm_to_vmem [thread:$0]  %s2, 4096, %s20, [#allocation3], 64, 64, 4
    $region13: #{spinal_actor_critic_forward.1} parent=1 // pred_fallthru
      _
    // Predicated region
    $region14: #{spinal_actor_critic_forward.1} parent=1 // pred_check
      _
    $region15: #{spinal_actor_critic_forward.1} parent=1 // pred_check_branch
      %27 = sbr.rel (0) target = $region17
    $region16: #{spinal_actor_critic_forward.1} parent=1 // pred_region
      _
    $region17: #{spinal_actor_critic_forward.1} parent=1 // pred_fallthru
      _
    // Predicated region
    $region18: #{spinal_actor_critic_forward.1} parent=1 // pred_check
      _
    $region19: #{spinal_actor_critic_forward.1} parent=1 // pred_check_branch
      %29 = sbr.rel (0) target = $region21
    $region20: #{spinal_actor_critic_forward.1} parent=1 // pred_region
      %30 = dma.done [#allocation3], 4096
    $region21: #{spinal_actor_critic_forward.1} parent=1 // pred_fallthru
      _
    %v32 = vlaneseq
    %v33 = vand.u32 %v32, 127
    %vm34 = vcmp.ge.s32.totalorder %v33, 0
    %vm35 = vcmp.lt.s32.totalorder %v33, 32
    %vm36 = vmand %vm34, %vm35
    %vm37 = vcmp.ge.s32.totalorder %v33, 32
    %vm38 = vcmp.lt.s32.totalorder %v33, 64
    %vm39 = vmand %vm37, %vm38
    %vm40 = vcmp.ge.s32.totalorder %v33, 64
    %vm41 = vcmp.lt.s32.totalorder %v33, 96
    %vm42 = vmand %vm40, %vm41
    %vm43 = vcmp.ge.s32.totalorder %v33, 96
    %vm44 = vcmp.lt.s32.totalorder %v33, 128
    %vm45 = vmand %vm43, %vm44
    %v46 = vld [vmem:[%s3] sm:$0x1]
    %v47 = vld [vmem:[%s3 + $0x1] sm:$0x1]
    %v48 = vld [vmem:[%s1] sm:$0xf]
    %v49 = vld [vmem:[%s1 + $0x4] sm:$0xf]
    %v50 = vld [vmem:[#allocation2] sm:$0xf]
    %v51 = vld [vmem:[#allocation2 + $0x4] sm:$0xf]
    %v52 = vld [vmem:[#allocation2 + $0x8] sm:$0xf]
    %v53 = vld [vmem:[#allocation2 + $0xc] sm:$0xf]
    %v54 = vld [vmem:[#allocation2 + $0x10] sm:$0xf]
    %v55 = vld [vmem:[#allocation2 + $0x14] sm:$0xf]
    %v56 = vld [vmem:[#allocation2 + $0x18] sm:$0xf]
    %v57 = vld [vmem:[#allocation2 + $0x1c] sm:$0xf]
    %v58 = vld [vmem:[#allocation2 + $0x20] sm:$0xf]
    %v59 = vld [vmem:[#allocation2 + $0x24] sm:$0xf]
    %v60 = vld [vmem:[#allocation2 + $0x28] sm:$0xf]
    %v61 = vld [vmem:[#allocation2 + $0x2c] sm:$0xf]
    %v62 = vld [vmem:[#allocation2 + $0x30] sm:$0xf]
    %v63 = vld [vmem:[#allocation2 + $0x34] sm:$0xf]
    %v64 = vld [vmem:[#allocation2 + $0x38] sm:$0xf]
    %v65 = vld [vmem:[#allocation2 + $0x3c] sm:$0xf]
    %s66 = scalar_lea.vmem [#allocation2], 64
    %v67 = vld [vmem:[%s66] sm:$0xf]
    %v68 = vld [vmem:[%s66 + $0x4] sm:$0xf]
    %v69 = vld [vmem:[%s66 + $0x8] sm:$0xf]
    %v70 = vld [vmem:[%s66 + $0xc] sm:$0xf]
    %v71 = vld [vmem:[%s66 + $0x10] sm:$0xf]
    %v72 = vld [vmem:[%s66 + $0x14] sm:$0xf]
    %v73 = vld [vmem:[%s66 + $0x18] sm:$0xf]
    %v74 = vld [vmem:[%s66 + $0x1c] sm:$0xf]
    %v75 = vld [vmem:[%s66 + $0x20] sm:$0xf]
    %v76 = vld [vmem:[%s66 + $0x24] sm:$0xf]
    %v77 = vld [vmem:[%s66 + $0x28] sm:$0xf]
    %v78 = vld [vmem:[%s66 + $0x2c] sm:$0xf]
    %v79 = vld [vmem:[%s66 + $0x30] sm:$0xf]
    %v80 = vld [vmem:[%s66 + $0x34] sm:$0xf]
    %v81 = vld [vmem:[%s66 + $0x38] sm:$0xf]
    %v82 = vld [vmem:[%s66 + $0x3c] sm:$0xf]
    %s83 = scalar_lea.vmem [#allocation2], 128
    %v84 = vld [vmem:[%s83] sm:$0xf]
    %v85 = vld [vmem:[%s83 + $0x4] sm:$0xf]
    %v86 = vld [vmem:[%s83 + $0x8] sm:$0xf]
    %v87 = vld [vmem:[%s83 + $0xc] sm:$0xf]
    %v88 = vld [vmem:[%s83 + $0x10] sm:$0xf]
    %v89 = vld [vmem:[%s83 + $0x14] sm:$0xf]
    %v90 = vld [vmem:[%s83 + $0x18] sm:$0xf]
    %v91 = vld [vmem:[%s83 + $0x1c] sm:$0xf]
    %v92 = vld [vmem:[%s83 + $0x20] sm:$0xf]
    %v93 = vld [vmem:[%s83 + $0x24] sm:$0xf]
    %v94 = vld [vmem:[%s83 + $0x28] sm:$0xf]
    %v95 = vld [vmem:[%s83 + $0x2c] sm:$0xf]
    %v96 = vld [vmem:[%s83 + $0x30] sm:$0xf]
    %v97 = vld [vmem:[%s83 + $0x34] sm:$0xf]
    %v98 = vld [vmem:[%s83 + $0x38] sm:$0xf]
    %v99 = vld [vmem:[%s83 + $0x3c] sm:$0xf]
    %s100 = scalar_lea.vmem [#allocation2], 192
    %v101 = vld [vmem:[%s100] sm:$0xf]
    %v102 = vld [vmem:[%s100 + $0x4] sm:$0xf]
    %v103 = vld [vmem:[%s100 + $0x8] sm:$0xf]
    %v104 = vld [vmem:[%s100 + $0xc] sm:$0xf]
    %v105 = vld [vmem:[%s100 + $0x10] sm:$0xf]
    %v106 = vld [vmem:[%s100 + $0x14] sm:$0xf]
    %v107 = vld [vmem:[%s100 + $0x18] sm:$0xf]
    %v108 = vld [vmem:[%s100 + $0x1c] sm:$0xf]
    %v109 = vld [vmem:[%s100 + $0x20] sm:$0xf]
    %v110 = vld [vmem:[%s100 + $0x24] sm:$0xf]
    %v111 = vld [vmem:[%s100 + $0x28] sm:$0xf]
    %v112 = vld [vmem:[%s100 + $0x2c] sm:$0xf]
    %v113 = vld [vmem:[%s100 + $0x30] sm:$0xf]
    %v114 = vld [vmem:[%s100 + $0x34] sm:$0xf]
    %v115 = vld [vmem:[%s100 + $0x38] sm:$0xf]
    %v116 = vld [vmem:[%s100 + $0x3c] sm:$0xf]
    %v117 = vld [vmem:[%s0] sm:$0xff]
    %v118 = vpack.c.bf16 %v117, %v117
    %v119 = vlaneseq
    %v120 = vshrl.u32 %v119, 7
    %v121 = vsub.s32 0, %v120
    %v122 = vrot.slane %v46, %v121
    %v125 = vunpack.c.l.b16 %v48
    %v126 = vunpack.c.l.b16 %v49
    %v127 = vpack.c.b16 %v126, %v125
    %vm129 = vcmask 130048
    %v131 = vsel %vm129, %v118, 0
    %133 = vmatprep.subr.bf16.mxu0 0
    %134 = vmatpush1.bf16.msra.mxu0 0
    %135 = vmatprep.subr.bf16.mxu0 0
    %136 = vmatpush1.bf16.msra.mxu0 0
    %137 = vmatprep.subr.bf16.mxu0 0
    %138 = vmatpush1.bf16.msra.mxu0 0
    %139 = vmatprep.subr.bf16.mxu0 0
    %140 = vmatpush1.bf16.msra.mxu0 0
    %141 = vmatprep.subr.bf16.mxu0 0
    %142 = vmatpush1.bf16.msra.mxu0 0
    %143 = vmatprep.subr.bf16.mxu0 0
    %144 = vmatpush1.bf16.msra.mxu0 0
    %145 = vmatprep.subr.bf16.mxu0 0
    %146 = vmatpush1.bf16.msra.mxu0 0
    %147 = vmatprep.subr.bf16.mxu0 0
    %148 = vmatpush1.bf16.msra.mxu0 %v127
    %149 = vmatprep.subr.bf16.mxu0 0
    %150 = vmatpush2.bf16.msra.mxu0 0
    %151 = vmatprep.subr.bf16.mxu0 0
    %152 = vmatpush2.bf16.msra.mxu0 0
    %153 = vmatprep.subr.bf16.mxu0 0
    %154 = vmatpush2.bf16.msra.mxu0 0
    %155 = vmatprep.subr.bf16.mxu0 0
    %156 = vmatpush2.bf16.msra.mxu0 0
    %157 = vmatprep.subr.bf16.mxu0 0
    %158 = vmatpush2.bf16.msra.mxu0 0
    %159 = vmatprep.subr.bf16.mxu0 0
    %160 = vmatpush2.bf16.msra.mxu0 0
    %161 = vmatprep.subr.bf16.mxu0 0
    %162 = vmatpush2.bf16.msra.mxu0 0
    %163 = vmatprep.subr.bf16.mxu0 0
    %164 = vmatpush2.bf16.msra.mxu0 0
    %165 = vmatprep.mubr.bf16.mxu0 0
    %166 = vmatmul.mubr.bf16.gmra.mxu0 %v131
    %v167 = vpop.f32.mrf.mxu0
    %v168 = vadd.f32 %v122, %v167
    %v169 = vpop.f32.mrf.mxu0
    %v170 = vpop.f32.mrf.mxu0
    %v171 = vpop.f32.mrf.mxu0
    %172 = vdwg.mxu0
    %v173 = vmax.f32 %v168, 0.0
    %v174 = vsel %vm36, 1, 0
    %vm175 = vcmp.eq.s32.totalorder %v174, 1
    %v176 = vsel %vm175, %v173, 0.0
    %v177 = vpack.c.bf16 %v176, %v176
    %v194 = vunpack.c.l.b16 %v50
    %v195 = vunpack.c.l.b16 %v51
    %v196 = vunpack.c.l.b16 %v52
    %v197 = vunpack.c.l.b16 %v53
    %v198 = vunpack.c.l.b16 %v54
    %v199 = vunpack.c.l.b16 %v55
    %v200 = vunpack.c.l.b16 %v56
    %v201 = vunpack.c.l.b16 %v57
    %v202 = vunpack.c.l.b16 %v58
    %v203 = vunpack.c.l.b16 %v59
    %v204 = vunpack.c.l.b16 %v60
    %v205 = vunpack.c.l.b16 %v61
    %v206 = vunpack.c.l.b16 %v62
    %v207 = vunpack.c.l.b16 %v63
    %v208 = vunpack.c.l.b16 %v64
    %v209 = vunpack.c.l.b16 %v65
    %v210 = vpack.c.b16 %v195, %v194
    %v211 = vpack.c.b16 %v197, %v196
    %v212 = vpack.c.b16 %v199, %v198
    %v213 = vpack.c.b16 %v201, %v200
    %v214 = vpack.c.b16 %v203, %v202
    %v215 = vpack.c.b16 %v205, %v204
    %v216 = vpack.c.b16 %v207, %v206
    %v217 = vpack.c.b16 %v209, %v208
    %226 = vmatprep.subr.bf16.mxu0 0
    %227 = vmatpush1.bf16.msra.mxu0 %v217
    %228 = vmatprep.subr.bf16.mxu0 0
    %229 = vmatpush1.bf16.msra.mxu0 %v216
    %230 = vmatprep.subr.bf16.mxu0 0
    %231 = vmatpush1.bf16.msra.mxu0 %v215
    %232 = vmatprep.subr.bf16.mxu0 0
    %233 = vmatpush1.bf16.msra.mxu0 %v214
    %234 = vmatprep.subr.bf16.mxu0 0
    %235 = vmatpush1.bf16.msra.mxu0 %v213
    %236 = vmatprep.subr.bf16.mxu0 0
    %237 = vmatpush1.bf16.msra.mxu0 %v212
    %238 = vmatprep.subr.bf16.mxu0 0
    %239 = vmatpush1.bf16.msra.mxu0 %v211
    %240 = vmatprep.subr.bf16.mxu0 0
    %241 = vmatpush1.bf16.msra.mxu0 %v210
    %242 = vmatprep.subr.bf16.mxu0 0
    %243 = vmatpush2.bf16.msra.mxu0 0
    %244 = vmatprep.subr.bf16.mxu0 0
    %245 = vmatpush2.bf16.msra.mxu0 0
    %246 = vmatprep.subr.bf16.mxu0 0
    %247 = vmatpush2.bf16.msra.mxu0 0
    %248 = vmatprep.subr.bf16.mxu0 0
    %249 = vmatpush2.bf16.msra.mxu0 0
    %250 = vmatprep.subr.bf16.mxu0 0
    %251 = vmatpush2.bf16.msra.mxu0 0
    %252 = vmatprep.subr.bf16.mxu0 0
    %253 = vmatpush2.bf16.msra.mxu0 0
    %254 = vmatprep.subr.bf16.mxu0 0
    %255 = vmatpush2.bf16.msra.mxu0 0
    %256 = vmatprep.subr.bf16.mxu0 0
    %257 = vmatpush2.bf16.msra.mxu0 0
    %258 = vmatprep.mubr.bf16.mxu0 0
    %259 = vmatmul.mubr.bf16.gmra.mxu0 %v177
    %v260 = vpop.f32.mrf.mxu0
    %v261 = vadd.f32 0.0, %v260
    %v262 = vpop.f32.mrf.mxu0
    %v263 = vpop.f32.mrf.mxu0
    %v264 = vpop.f32.mrf.mxu0
    %265 = vdwg.mxu0
    %v266 = vadd.f32 %v168, %v261
    %v267 = vmax.f32 %v266, 0.0
    %v268 = vsel %vm39, 1, 0
    %vm269 = vcmp.eq.s32.totalorder %v268, 1
    %v270 = vsel %vm269, %v267, 0.0
    %v271 = vpack.c.bf16 %v270, %v270
    %v288 = vunpack.c.l.b16 %v67
    %v289 = vunpack.c.l.b16 %v68
    %v290 = vunpack.c.l.b16 %v69
    %v291 = vunpack.c.l.b16 %v70
    %v292 = vunpack.c.l.b16 %v71
    %v293 = vunpack.c.l.b16 %v72
    %v294 = vunpack.c.l.b16 %v73
    %v295 = vunpack.c.l.b16 %v74
    %v296 = vunpack.c.l.b16 %v75
    %v297 = vunpack.c.l.b16 %v76
    %v298 = vunpack.c.l.b16 %v77
    %v299 = vunpack.c.l.b16 %v78
    %v300 = vunpack.c.l.b16 %v79
    %v301 = vunpack.c.l.b16 %v80
    %v302 = vunpack.c.l.b16 %v81
    %v303 = vunpack.c.l.b16 %v82
    %v304 = vpack.c.b16 %v289, %v288
    %v305 = vpack.c.b16 %v291, %v290
    %v306 = vpack.c.b16 %v293, %v292
    %v307 = vpack.c.b16 %v295, %v294
    %v308 = vpack.c.b16 %v297, %v296
    %v309 = vpack.c.b16 %v299, %v298
    %v310 = vpack.c.b16 %v301, %v300
    %v311 = vpack.c.b16 %v303, %v302
    %320 = vmatprep.subr.bf16.mxu0 0
    %321 = vmatpush1.bf16.msra.mxu0 %v311
    %322 = vmatprep.subr.bf16.mxu0 0
    %323 = vmatpush1.bf16.msra.mxu0 %v310
    %324 = vmatprep.subr.bf16.mxu0 0
    %325 = vmatpush1.bf16.msra.mxu0 %v309
    %326 = vmatprep.subr.bf16.mxu0 0
    %327 = vmatpush1.bf16.msra.mxu0 %v308
    %328 = vmatprep.subr.bf16.mxu0 0
    %329 = vmatpush1.bf16.msra.mxu0 %v307
    %330 = vmatprep.subr.bf16.mxu0 0
    %331 = vmatpush1.bf16.msra.mxu0 %v306
    %332 = vmatprep.subr.bf16.mxu0 0
    %333 = vmatpush1.bf16.msra.mxu0 %v305
    %334 = vmatprep.subr.bf16.mxu0 0
    %335 = vmatpush1.bf16.msra.mxu0 %v304
    %336 = vmatprep.subr.bf16.mxu0 0
    %337 = vmatpush2.bf16.msra.mxu0 0
    %338 = vmatprep.subr.bf16.mxu0 0
    %339 = vmatpush2.bf16.msra.mxu0 0
    %340 = vmatprep.subr.bf16.mxu0 0
    %341 = vmatpush2.bf16.msra.mxu0 0
    %342 = vmatprep.subr.bf16.mxu0 0
    %343 = vmatpush2.bf16.msra.mxu0 0
    %344 = vmatprep.subr.bf16.mxu0 0
    %345 = vmatpush2.bf16.msra.mxu0 0
    %346 = vmatprep.subr.bf16.mxu0 0
    %347 = vmatpush2.bf16.msra.mxu0 0
    %348 = vmatprep.subr.bf16.mxu0 0
    %349 = vmatpush2.bf16.msra.mxu0 0
    %350 = vmatprep.subr.bf16.mxu0 0
    %351 = vmatpush2.bf16.msra.mxu0 0
    %352 = vmatprep.mubr.bf16.mxu0 0
    %353 = vmatmul.mubr.bf16.gmra.mxu0 %v271
    %v354 = vpop.f32.mrf.mxu0
    %v355 = vadd.f32 0.0, %v354
    %v356 = vpop.f32.mrf.mxu0
    %v357 = vpop.f32.mrf.mxu0
    %v358 = vpop.f32.mrf.mxu0
    %359 = vdwg.mxu0
    %v360 = vadd.f32 %v168, %v355
    %v361 = vmax.f32 %v360, 0.0
    %v362 = vsel %vm42, 1, 0
    %vm363 = vcmp.eq.s32.totalorder %v362, 1
    %v364 = vsel %vm363, %v361, 0.0
    %v365 = vpack.c.bf16 %v364, %v364
    %v382 = vunpack.c.l.b16 %v84
    %v383 = vunpack.c.l.b16 %v85
    %v384 = vunpack.c.l.b16 %v86
    %v385 = vunpack.c.l.b16 %v87
    %v386 = vunpack.c.l.b16 %v88
    %v387 = vunpack.c.l.b16 %v89
    %v388 = vunpack.c.l.b16 %v90
    %v389 = vunpack.c.l.b16 %v91
    %v390 = vunpack.c.l.b16 %v92
    %v391 = vunpack.c.l.b16 %v93
    %v392 = vunpack.c.l.b16 %v94
    %v393 = vunpack.c.l.b16 %v95
    %v394 = vunpack.c.l.b16 %v96
    %v395 = vunpack.c.l.b16 %v97
    %v396 = vunpack.c.l.b16 %v98
    %v397 = vunpack.c.l.b16 %v99
    %v398 = vpack.c.b16 %v383, %v382
    %v399 = vpack.c.b16 %v385, %v384
    %v400 = vpack.c.b16 %v387, %v386
    %v401 = vpack.c.b16 %v389, %v388
    %v402 = vpack.c.b16 %v391, %v390
    %v403 = vpack.c.b16 %v393, %v392
    %v404 = vpack.c.b16 %v395, %v394
    %v405 = vpack.c.b16 %v397, %v396
    %414 = vmatprep.subr.bf16.mxu0 0
    %415 = vmatpush1.bf16.msra.mxu0 %v405
    %416 = vmatprep.subr.bf16.mxu0 0
    %417 = vmatpush1.bf16.msra.mxu0 %v404
    %418 = vmatprep.subr.bf16.mxu0 0
    %419 = vmatpush1.bf16.msra.mxu0 %v403
    %420 = vmatprep.subr.bf16.mxu0 0
    %421 = vmatpush1.bf16.msra.mxu0 %v402
    %422 = vmatprep.subr.bf16.mxu0 0
    %423 = vmatpush1.bf16.msra.mxu0 %v401
    %424 = vmatprep.subr.bf16.mxu0 0
    %425 = vmatpush1.bf16.msra.mxu0 %v400
    %426 = vmatprep.subr.bf16.mxu0 0
    %427 = vmatpush1.bf16.msra.mxu0 %v399
    %428 = vmatprep.subr.bf16.mxu0 0
    %429 = vmatpush1.bf16.msra.mxu0 %v398
    %430 = vmatprep.subr.bf16.mxu0 0
    %431 = vmatpush2.bf16.msra.mxu0 0
    %432 = vmatprep.subr.bf16.mxu0 0
    %433 = vmatpush2.bf16.msra.mxu0 0
    %434 = vmatprep.subr.bf16.mxu0 0
    %435 = vmatpush2.bf16.msra.mxu0 0
    %436 = vmatprep.subr.bf16.mxu0 0
    %437 = vmatpush2.bf16.msra.mxu0 0
    %438 = vmatprep.subr.bf16.mxu0 0
    %439 = vmatpush2.bf16.msra.mxu0 0
    %440 = vmatprep.subr.bf16.mxu0 0
    %441 = vmatpush2.bf16.msra.mxu0 0
    %442 = vmatprep.subr.bf16.mxu0 0
    %443 = vmatpush2.bf16.msra.mxu0 0
    %444 = vmatprep.subr.bf16.mxu0 0
    %445 = vmatpush2.bf16.msra.mxu0 0
    %446 = vmatprep.mubr.bf16.mxu0 0
    %447 = vmatmul.mubr.bf16.gmra.mxu0 %v365
    %v448 = vpop.f32.mrf.mxu0
    %v449 = vadd.f32 0.0, %v448
    %v450 = vpop.f32.mrf.mxu0
    %v451 = vpop.f32.mrf.mxu0
    %v452 = vpop.f32.mrf.mxu0
    %453 = vdwg.mxu0
    %v454 = vadd.f32 %v168, %v449
    %v455 = vmax.f32 %v454, 0.0
    %v456 = vsel %vm45, 1, 0
    %vm457 = vcmp.eq.s32.totalorder %v456, 1
    %v458 = vsel %vm457, %v455, 0.0
    %v459 = vadd.f32 %v176, %v270
    %v460 = vadd.f32 %v459, %v364
    %v461 = vadd.f32 %v460, %v458
    %v462 = vpack.c.bf16 %v461, %v461
    %v463 = vlaneseq
    %v464 = vshrl.u32 %v463, 7
    %v465 = vsub.s32 0, %v464
    %v466 = vrot.slane %v47, %v465
    %v483 = vunpack.c.l.b16 %v101
    %v484 = vunpack.c.l.b16 %v102
    %v485 = vunpack.c.l.b16 %v103
    %v486 = vunpack.c.l.b16 %v104
    %v487 = vunpack.c.l.b16 %v105
    %v488 = vunpack.c.l.b16 %v106
    %v489 = vunpack.c.l.b16 %v107
    %v490 = vunpack.c.l.b16 %v108
    %v491 = vunpack.c.l.b16 %v109
    %v492 = vunpack.c.l.b16 %v110
    %v493 = vunpack.c.l.b16 %v111
    %v494 = vunpack.c.l.b16 %v112
    %v495 = vunpack.c.l.b16 %v113
    %v496 = vunpack.c.l.b16 %v114
    %v497 = vunpack.c.l.b16 %v115
    %v498 = vunpack.c.l.b16 %v116
    %v499 = vpack.c.b16 %v484, %v483
    %v500 = vpack.c.b16 %v486, %v485
    %v501 = vpack.c.b16 %v488, %v487
    %v502 = vpack.c.b16 %v490, %v489
    %v503 = vpack.c.b16 %v492, %v491
    %v504 = vpack.c.b16 %v494, %v493
    %v505 = vpack.c.b16 %v496, %v495
    %v506 = vpack.c.b16 %v498, %v497
    %515 = vmatprep.subr.bf16.mxu0 0
    %516 = vmatpush1.bf16.msra.mxu0 %v506
    %517 = vmatprep.subr.bf16.mxu0 0
    %518 = vmatpush1.bf16.msra.mxu0 %v505
    %519 = vmatprep.subr.bf16.mxu0 0
    %520 = vmatpush1.bf16.msra.mxu0 %v504
    %521 = vmatprep.subr.bf16.mxu0 0
    %522 = vmatpush1.bf16.msra.mxu0 %v503
    %523 = vmatprep.subr.bf16.mxu0 0
    %524 = vmatpush1.bf16.msra.mxu0 %v502
    %525 = vmatprep.subr.bf16.mxu0 0
    %526 = vmatpush1.bf16.msra.mxu0 %v501
    %527 = vmatprep.subr.bf16.mxu0 0
    %528 = vmatpush1.bf16.msra.mxu0 %v500
    %529 = vmatprep.subr.bf16.mxu0 0
    %530 = vmatpush1.bf16.msra.mxu0 %v499
    %531 = vmatprep.subr.bf16.mxu0 0
    %532 = vmatpush2.bf16.msra.mxu0 0
    %533 = vmatprep.subr.bf16.mxu0 0
    %534 = vmatpush2.bf16.msra.mxu0 0
    %535 = vmatprep.subr.bf16.mxu0 0
    %536 = vmatpush2.bf16.msra.mxu0 0
    %537 = vmatprep.subr.bf16.mxu0 0
    %538 = vmatpush2.bf16.msra.mxu0 0
    %539 = vmatprep.subr.bf16.mxu0 0
    %540 = vmatpush2.bf16.msra.mxu0 0
    %541 = vmatprep.subr.bf16.mxu0 0
    %542 = vmatpush2.bf16.msra.mxu0 0
    %543 = vmatprep.subr.bf16.mxu0 0
    %544 = vmatpush2.bf16.msra.mxu0 0
    %545 = vmatprep.subr.bf16.mxu0 0
    %546 = vmatpush2.bf16.msra.mxu0 0
    %547 = vmatprep.mubr.bf16.mxu0 0
    %548 = vmatmul.mubr.bf16.gmra.mxu0 %v462
    %v549 = vpop.f32.mrf.mxu0
    %v550 = vadd.f32 %v466, %v549
    %v551 = vpop.f32.mrf.mxu0
    %v552 = vpop.f32.mrf.mxu0
    %v553 = vpop.f32.mrf.mxu0
    %554 = vdwg.mxu0
    %555 = vst [vmem:[%s4] sm:$0xff] %v550
    %v556 = vld [vmem:[%s0 + $0x8] sm:$0xff]
    %v557 = vpack.c.bf16 %v556, %v556
    %v559 = vsel %vm129, %v557, 0
    %561 = vmatprep.subr.bf16.mxu0 0
    %562 = vmatpush1.bf16.msra.mxu0 0
    %563 = vmatprep.subr.bf16.mxu0 0
    %564 = vmatpush1.bf16.msra.mxu0 0
    %565 = vmatprep.subr.bf16.mxu0 0
    %566 = vmatpush1.bf16.msra.mxu0 0
    %567 = vmatprep.subr.bf16.mxu0 0
    %568 = vmatpush1.bf16.msra.mxu0 0
    %569 = vmatprep.subr.bf16.mxu0 0
    %570 = vmatpush1.bf16.msra.mxu0 0
    %571 = vmatprep.subr.bf16.mxu0 0
    %572 = vmatpush1.bf16.msra.mxu0 0
    %573 = vmatprep.subr.bf16.mxu0 0
    %574 = vmatpush1.bf16.msra.mxu0 0
    %575 = vmatprep.subr.bf16.mxu0 0
    %576 = vmatpush1.bf16.msra.mxu0 %v127
    %577 = vmatprep.subr.bf16.mxu0 0
    %578 = vmatpush2.bf16.msra.mxu0 0
    %579 = vmatprep.subr.bf16.mxu0 0
    %580 = vmatpush2.bf16.msra.mxu0 0
    %581 = vmatprep.subr.bf16.mxu0 0
    %582 = vmatpush2.bf16.msra.mxu0 0
    %583 = vmatprep.subr.bf16.mxu0 0
    %584 = vmatpush2.bf16.msra.mxu0 0
    %585 = vmatprep.subr.bf16.mxu0 0
    %586 = vmatpush2.bf16.msra.mxu0 0
    %587 = vmatprep.subr.bf16.mxu0 0
    %588 = vmatpush2.bf16.msra.mxu0 0
    %589 = vmatprep.subr.bf16.mxu0 0
    %590 = vmatpush2.bf16.msra.mxu0 0
    %591 = vmatprep.subr.bf16.mxu0 0
    %592 = vmatpush2.bf16.msra.mxu0 0
    %593 = vmatprep.mubr.bf16.mxu0 0
    %594 = vmatmul.mubr.bf16.gmra.mxu0 %v559
    %v595 = vpop.f32.mrf.mxu0
    %v596 = vadd.f32 %v122, %v595
    %v597 = vpop.f32.mrf.mxu0
    %v598 = vpop.f32.mrf.mxu0
    %v599 = vpop.f32.mrf.mxu0
    %600 = vdwg.mxu0
    %v601 = vmax.f32 %v596, 0.0
    %v602 = vsel %vm175, %v601, 0.0
    %v603 = vpack.c.bf16 %v602, %v602
    %604 = vmatprep.subr.bf16.mxu0 0
    %605 = vmatpush1.bf16.msra.mxu0 %v217
    %606 = vmatprep.subr.bf16.mxu0 0
    %607 = vmatpush1.bf16.msra.mxu0 %v216
    %608 = vmatprep.subr.bf16.mxu0 0
    %609 = vmatpush1.bf16.msra.mxu0 %v215
    %610 = vmatprep.subr.bf16.mxu0 0
    %611 = vmatpush1.bf16.msra.mxu0 %v214
    %612 = vmatprep.subr.bf16.mxu0 0
    %613 = vmatpush1.bf16.msra.mxu0 %v213
    %614 = vmatprep.subr.bf16.mxu0 0
    %615 = vmatpush1.bf16.msra.mxu0 %v212
    %616 = vmatprep.subr.bf16.mxu0 0
    %617 = vmatpush1.bf16.msra.mxu0 %v211
    %618 = vmatprep.subr.bf16.mxu0 0
    %619 = vmatpush1.bf16.msra.mxu0 %v210
    %620 = vmatprep.subr.bf16.mxu0 0
    %621 = vmatpush2.bf16.msra.mxu0 0
    %622 = vmatprep.subr.bf16.mxu0 0
    %623 = vmatpush2.bf16.msra.mxu0 0
    %624 = vmatprep.subr.bf16.mxu0 0
    %625 = vmatpush2.bf16.msra.mxu0 0
    %626 = vmatprep.subr.bf16.mxu0 0
    %627 = vmatpush2.bf16.msra.mxu0 0
    %628 = vmatprep.subr.bf16.mxu0 0
    %629 = vmatpush2.bf16.msra.mxu0 0
    %630 = vmatprep.subr.bf16.mxu0 0
    %631 = vmatpush2.bf16.msra.mxu0 0
    %632 = vmatprep.subr.bf16.mxu0 0
    %633 = vmatpush2.bf16.msra.mxu0 0
    %634 = vmatprep.subr.bf16.mxu0 0
    %635 = vmatpush2.bf16.msra.mxu0 0
    %636 = vmatprep.mubr.bf16.mxu0 0
    %637 = vmatmul.mubr.bf16.gmra.mxu0 %v603
    %v638 = vpop.f32.mrf.mxu0
    %v639 = vadd.f32 0.0, %v638
    %v640 = vpop.f32.mrf.mxu0
    %v641 = vpop.f32.mrf.mxu0
    %v642 = vpop.f32.mrf.mxu0
    %643 = vdwg.mxu0
    %v644 = vadd.f32 %v596, %v639
    %v645 = vmax.f32 %v644, 0.0
    %v646 = vsel %vm269, %v645, 0.0
    %v647 = vpack.c.bf16 %v646, %v646
    %648 = vmatprep.subr.bf16.mxu0 0
    %649 = vmatpush1.bf16.msra.mxu0 %v311
    %650 = vmatprep.subr.bf16.mxu0 0
    %651 = vmatpush1.bf16.msra.mxu0 %v310
    %652 = vmatprep.subr.bf16.mxu0 0
    %653 = vmatpush1.bf16.msra.mxu0 %v309
    %654 = vmatprep.subr.bf16.mxu0 0
    %655 = vmatpush1.bf16.msra.mxu0 %v308
    %656 = vmatprep.subr.bf16.mxu0 0
    %657 = vmatpush1.bf16.msra.mxu0 %v307
    %658 = vmatprep.subr.bf16.mxu0 0
    %659 = vmatpush1.bf16.msra.mxu0 %v306
    %660 = vmatprep.subr.bf16.mxu0 0
    %661 = vmatpush1.bf16.msra.mxu0 %v305
    %662 = vmatprep.subr.bf16.mxu0 0
    %663 = vmatpush1.bf16.msra.mxu0 %v304
    %664 = vmatprep.subr.bf16.mxu0 0
    %665 = vmatpush2.bf16.msra.mxu0 0
    %666 = vmatprep.subr.bf16.mxu0 0
    %667 = vmatpush2.bf16.msra.mxu0 0
    %668 = vmatprep.subr.bf16.mxu0 0
    %669 = vmatpush2.bf16.msra.mxu0 0
    %670 = vmatprep.subr.bf16.mxu0 0
    %671 = vmatpush2.bf16.msra.mxu0 0
    %672 = vmatprep.subr.bf16.mxu0 0
    %673 = vmatpush2.bf16.msra.mxu0 0
    %674 = vmatprep.subr.bf16.mxu0 0
    %675 = vmatpush2.bf16.msra.mxu0 0
    %676 = vmatprep.subr.bf16.mxu0 0
    %677 = vmatpush2.bf16.msra.mxu0 0
    %678 = vmatprep.subr.bf16.mxu0 0
    %679 = vmatpush2.bf16.msra.mxu0 0
    %680 = vmatprep.mubr.bf16.mxu0 0
    %681 = vmatmul.mubr.bf16.gmra.mxu0 %v647
    %v682 = vpop.f32.mrf.mxu0
    %v683 = vadd.f32 0.0, %v682
    %v684 = vpop.f32.mrf.mxu0
    %v685 = vpop.f32.mrf.mxu0
    %v686 = vpop.f32.mrf.mxu0
    %687 = vdwg.mxu0
    %v688 = vadd.f32 %v596, %v683
    %v689 = vmax.f32 %v688, 0.0
    %v690 = vsel %vm363, %v689, 0.0
    %v691 = vpack.c.bf16 %v690, %v690
    %692 = vmatprep.subr.bf16.mxu0 0
    %693 = vmatpush1.bf16.msra.mxu0 %v405
    %694 = vmatprep.subr.bf16.mxu0 0
    %695 = vmatpush1.bf16.msra.mxu0 %v404
    %696 = vmatprep.subr.bf16.mxu0 0
    %697 = vmatpush1.bf16.msra.mxu0 %v403
    %698 = vmatprep.subr.bf16.mxu0 0
    %699 = vmatpush1.bf16.msra.mxu0 %v402
    %700 = vmatprep.subr.bf16.mxu0 0
    %701 = vmatpush1.bf16.msra.mxu0 %v401
    %702 = vmatprep.subr.bf16.mxu0 0
    %703 = vmatpush1.bf16.msra.mxu0 %v400
    %704 = vmatprep.subr.bf16.mxu0 0
    %705 = vmatpush1.bf16.msra.mxu0 %v399
    %706 = vmatprep.subr.bf16.mxu0 0
    %707 = vmatpush1.bf16.msra.mxu0 %v398
    %708 = vmatprep.subr.bf16.mxu0 0
    %709 = vmatpush2.bf16.msra.mxu0 0
    %710 = vmatprep.subr.bf16.mxu0 0
    %711 = vmatpush2.bf16.msra.mxu0 0
    %712 = vmatprep.subr.bf16.mxu0 0
    %713 = vmatpush2.bf16.msra.mxu0 0
    %714 = vmatprep.subr.bf16.mxu0 0
    %715 = vmatpush2.bf16.msra.mxu0 0
    %716 = vmatprep.subr.bf16.mxu0 0
    %717 = vmatpush2.bf16.msra.mxu0 0
    %718 = vmatprep.subr.bf16.mxu0 0
    %719 = vmatpush2.bf16.msra.mxu0 0
    %720 = vmatprep.subr.bf16.mxu0 0
    %721 = vmatpush2.bf16.msra.mxu0 0
    %722 = vmatprep.subr.bf16.mxu0 0
    %723 = vmatpush2.bf16.msra.mxu0 0
    %724 = vmatprep.mubr.bf16.mxu0 0
    %725 = vmatmul.mubr.bf16.gmra.mxu0 %v691
    %v726 = vpop.f32.mrf.mxu0
    %v727 = vadd.f32 0.0, %v726
    %v728 = vpop.f32.mrf.mxu0
    %v729 = vpop.f32.mrf.mxu0
    %v730 = vpop.f32.mrf.mxu0
    %731 = vdwg.mxu0
    %v732 = vadd.f32 %v596, %v727
    %v733 = vmax.f32 %v732, 0.0
    %v734 = vsel %vm457, %v733, 0.0
    %v735 = vadd.f32 %v602, %v646
    %v736 = vadd.f32 %v735, %v690
    %v737 = vadd.f32 %v736, %v734
    %v738 = vpack.c.bf16 %v737, %v737
    %739 = vmatprep.subr.bf16.mxu0 0
    %740 = vmatpush1.bf16.msra.mxu0 %v506
    %741 = vmatprep.subr.bf16.mxu0 0
    %742 = vmatpush1.bf16.msra.mxu0 %v505
    %743 = vmatprep.subr.bf16.mxu0 0
    %744 = vmatpush1.bf16.msra.mxu0 %v504
    %745 = vmatprep.subr.bf16.mxu0 0
    %746 = vmatpush1.bf16.msra.mxu0 %v503
    %747 = vmatprep.subr.bf16.mxu0 0
    %748 = vmatpush1.bf16.msra.mxu0 %v502
    %749 = vmatprep.subr.bf16.mxu0 0
    %750 = vmatpush1.bf16.msra.mxu0 %v501
    %751 = vmatprep.subr.bf16.mxu0 0
    %752 = vmatpush1.bf16.msra.mxu0 %v500
    %753 = vmatprep.subr.bf16.mxu0 0
    %754 = vmatpush1.bf16.msra.mxu0 %v499
    %755 = vmatprep.subr.bf16.mxu0 0
    %756 = vmatpush2.bf16.msra.mxu0 0
    %757 = vmatprep.subr.bf16.mxu0 0
    %758 = vmatpush2.bf16.msra.mxu0 0
    %759 = vmatprep.subr.bf16.mxu0 0
    %760 = vmatpush2.bf16.msra.mxu0 0
    %761 = vmatprep.subr.bf16.mxu0 0
    %762 = vmatpush2.bf16.msra.mxu0 0
    %763 = vmatprep.subr.bf16.mxu0 0
    %764 = vmatpush2.bf16.msra.mxu0 0
    %765 = vmatprep.subr.bf16.mxu0 0
    %766 = vmatpush2.bf16.msra.mxu0 0
    %767 = vmatprep.subr.bf16.mxu0 0
    %768 = vmatpush2.bf16.msra.mxu0 0
    %769 = vmatprep.subr.bf16.mxu0 0
    %770 = vmatpush2.bf16.msra.mxu0 0
    %771 = vmatprep.mubr.bf16.mxu0 0
    %772 = vmatmul.mubr.bf16.gmra.mxu0 %v738
    %v773 = vpop.f32.mrf.mxu0
    %v774 = vadd.f32 %v466, %v773
    %v775 = vpop.f32.mrf.mxu0
    %v776 = vpop.f32.mrf.mxu0
    %v777 = vpop.f32.mrf.mxu0
    %778 = vdwg.mxu0
    %779 = vst [vmem:[%s4 + $0x8] sm:$0xff] %v774
    // Predicated region
    $region22: #{spinal_actor_critic_forward.1} parent=1 // pred_check
      _
    $region23: #{spinal_actor_critic_forward.1} parent=1 // pred_check_branch
      %781 = sbr.rel (0) target = $region25
    $region24: #{spinal_actor_critic_forward.1} parent=1 // pred_region
      _
    $region25: #{spinal_actor_critic_forward.1} parent=1 // pred_fallthru
      _
    // Predicated region
    $region26: #{spinal_actor_critic_forward.1} parent=1 // pred_check
      _
    $region27: #{spinal_actor_critic_forward.1} parent=1 // pred_check_branch
      %783 = sbr.rel (0) target = $region29
    $region28: #{spinal_actor_critic_forward.1} parent=1 // pred_region
      _
    $region29: #{spinal_actor_critic_forward.1} parent=1 // pred_fallthru
      _
    %784 = vsyncpa [#allocation3], 1

</llo_original>
